<compile_context>
chip_gen: v6e
topology: v6e:2x2x1
jax: 0.10.0
libtpu: 0.0.40
codegen_flags: <defaults>
</compile_context>

<pallas_src>
import functools
import math

import jax
import jax.numpy as jnp
from jax.experimental import pallas as pl
from jax.experimental.pallas import tpu as pltpu


def _ce_kernel(p_ref, q_ref, out_ref, *, tb, tiles_per_split, rows, need_mask):
    c = pl.program_id(0)   # split index ('parallel'; maps to cores on v7x)
    j = pl.program_id(1)   # row-tile index inside the split ('arbitrary')

    # Output block (8, C) is resident across the j axis -> it IS the
    # vector accumulator (P3 pattern).
    @pl.when(j == 0)
    def _init():
        out_ref[...] = jnp.zeros_like(out_ref)

    p = p_ref[...].astype(jnp.float32)
    q = q_ref[...].astype(jnp.float32)
    contrib = -p * jnp.log(q)                       # VPU (mul/neg) + EUP (log)

    if need_mask:
        # Logical (unclamped) row ids; rows >= `rows` contribute 0.  The
        # select also squashes any NaN/Inf coming from undefined OOB data.
        row_base = (c * tiles_per_split + j) * tb
        row_ids = row_base + jax.lax.broadcasted_iota(
            jnp.int32, contrib.shape, 0)
        contrib = jnp.where(row_ids < rows, contrib, 0.0)

    # Pure VPU accumulation: fold 8-row chunks into the (8, C) accumulator.
    C = contrib.shape[-1]
    out_ref[...] += contrib.reshape(tb // 8, 8, C).sum(axis=0)


def naive_cross_entropy(p, q, reduction="mean", dim=1,
                        block_rows=None, num_splits=2):
    """Pallas implementation of NaiveCrossEntropy.forward(p, q)."""
    assert p.shape == q.shape, "p and q must have the same shape"
    ndim = p.ndim
    dim = dim % ndim

    # Move the reduction axis to lanes only when necessary — a transpose is an
    # extra full HBM pass for a mem-bound kernel.
    if dim != ndim - 1:
        perm = tuple(a for a in range(ndim) if a != dim) + (dim,)
        p = jnp.transpose(p, perm)
        q = jnp.transpose(q, perm)

    C = p.shape[-1]
    rows = int(math.prod(p.shape[:-1])) if ndim > 1 else 1
    p2 = p.reshape(rows, C)
    q2 = q.reshape(rows, C)

    itemsize = max(p2.dtype.itemsize, q2.dtype.itemsize)
    if block_rows is None:
        # Target ~1 MiB per (double-buffered) input tile, multiple of 8 rows,
        # capped at 1024 rows (>=512-row tiles reach ~85% of HBM roofline).
        budget = 1 << 20
        block_rows = (budget // max(1, C * itemsize)) // 8 * 8
        block_rows = max(8, min(1024, block_rows))

    rows_padded = -(-rows // 8) * 8
    tb = min(block_rows, rows_padded)
    tb = max(8, (tb // 8) * 8)                       # multiple of 8 rows

    n_tiles = pl.cdiv(rows, tb)
    splits = max(1, min(num_splits, n_tiles))
    tiles_per_split = pl.cdiv(n_tiles, splits)
    need_mask = (splits * tiles_per_split * tb) != rows

    kernel = functools.partial(
        _ce_kernel, tb=tb, tiles_per_split=tiles_per_split, rows=rows,
        need_mask=need_mask)

    def in_map(c, j):
        # Clamp so trailing (fully masked) iterations re-read a valid block
        # instead of issuing a DMA past the end of the array.
        return (jnp.minimum(c * tiles_per_split + j, n_tiles - 1), 0)

    partials = pl.pallas_call(
        kernel,
        out_shape=jax.ShapeDtypeStruct((splits * 8, C), jnp.float32),
        grid_spec=pltpu.PrefetchScalarGridSpec(
            num_scalar_prefetch=0,
            grid=(splits, tiles_per_split),
            in_specs=[
                pl.BlockSpec((tb, C), in_map),
                pl.BlockSpec((tb, C), in_map),
            ],
            out_specs=pl.BlockSpec((8, C), lambda c, j: (c, 0)),
        ),
        compiler_params=pltpu.CompilerParams(
            dimension_semantics=("parallel", "arbitrary"),
            vmem_limit_bytes=32 << 20,
        ),
    )(p2, q2)

    # Tiny final cross-lane reduce over (8*splits, C) partials done by XLA.
    total = jnp.sum(partials)
    if reduction == "sum":
        return total
    return total / rows


def _reference(p, q, reduction="mean", dim=1):
    ce = jnp.sum(-p * jnp.log(q), axis=dim)
    return jnp.sum(ce) if reduction == "sum" else jnp.mean(ce)


if __name__ == "__main__":
    key = jax.random.PRNGKey(0)
    k1, k2, k3, k4 = jax.random.split(key, 4)

    # Minibatch of probability pairs: (batch=8, classes=128), dim=1.
    B, C = 8, 128
    p = jax.nn.softmax(jax.random.normal(k1, (B, C), dtype=jnp.float32), axis=1)
    q = jax.nn.softmax(jax.random.normal(k2, (B, C), dtype=jnp.float32), axis=1)

    out = jax.block_until_ready(naive_cross_entropy(p, q, reduction="mean", dim=1))
    ref = _reference(p, q, reduction="mean", dim=1)
    assert jnp.allclose(out, ref, rtol=1e-5, atol=1e-5), (out, ref)

    out_s = jax.block_until_ready(naive_cross_entropy(p, q, reduction="sum", dim=1))
    ref_s = _reference(p, q, reduction="sum", dim=1)
    assert jnp.allclose(out_s, ref_s, rtol=1e-5, atol=1e-5), (out_s, ref_s)

    # Non-last reduction axis + rows not divisible by the tile: exercises the
    # transpose path, the masked/clamped trailing tiles and the 2-way split.
    p3 = jax.nn.softmax(jax.random.normal(k3, (2, 6, 9), dtype=jnp.float32), axis=1)
    q3 = jax.nn.softmax(jax.random.normal(k4, (2, 6, 9), dtype=jnp.float32), axis=1)
    out3 = jax.block_until_ready(
        naive_cross_entropy(p3, q3, reduction="mean", dim=1,
                            block_rows=8, num_splits=2))
    ref3 = _reference(p3, q3, reduction="mean", dim=1)
    assert jnp.allclose(out3, ref3, rtol=1e-5, atol=1e-5), (out3, ref3)

    print("KERNEL_OK")
</pallas_src>

<mosaic_0001>
module attributes {stable_mosaic.version = 11 : i64} {
  func.func @_ce_kernel(%arg0: i32, %arg1: i32, %arg2: memref<8x128xf32, #tpu.memory_space<vmem>>, %arg3: memref<8x128xf32, #tpu.memory_space<vmem>>, %arg4: memref<8x128xf32, #tpu.memory_space<vmem>>) attributes {dimension_semantics = [#tpu.dimension_semantics<parallel>, #tpu.dimension_semantics<arbitrary>], iteration_bounds = array<i64: 1, 1>, scalar_prefetch = 0 : i64, scratch_operands = 0 : i64, tpu.core_type = #tpu.core_type<tc>, window_params = [{transform_indices = @transform_0, window_bounds = array<i64: 8, 128>}, {transform_indices = @transform_1, window_bounds = array<i64: 8, 128>}, {transform_indices = @transform_2, window_bounds = array<i64: 8, 128>}]} {
    %c0_i32 = arith.constant 0 : i32
    %0 = arith.cmpi eq, %arg1, %c0_i32 : i32
    %1 = arith.extui %0 : i1 to i32
    %c0_i32_0 = arith.constant 0 : i32
    %2 = arith.cmpi ne, %1, %c0_i32_0 : i32
    scf.if %2 {
      %cst_9 = arith.constant 0.000000e+00 : f32
      %14 = vector.broadcast %cst_9 : f32 to vector<8x128xf32>
      %c0_10 = arith.constant 0 : index
      %c0_11 = arith.constant 0 : index
      %15 = vector.load %arg4[%c0_10, %c0_11] : memref<8x128xf32, #tpu.memory_space<vmem>>, vector<8x128xf32>
      tpu.vector_store %arg4[%c0_10, %c0_11], %14 {strides = array<i32>} : memref<8x128xf32, #tpu.memory_space<vmem>>, vector<8x128xf32>,
    } else {
    }
    %c0 = arith.constant 0 : index
    %c0_1 = arith.constant 0 : index
    %3 = vector.load %arg2[%c0, %c0_1] : memref<8x128xf32, #tpu.memory_space<vmem>>, vector<8x128xf32>
    %c0_2 = arith.constant 0 : index
    %c0_3 = arith.constant 0 : index
    %4 = vector.load %arg3[%c0_2, %c0_3] : memref<8x128xf32, #tpu.memory_space<vmem>>, vector<8x128xf32>
    %cst = arith.constant 0.000000e+00 : f32
    %5 = vector.broadcast %cst : f32 to vector<8x128xf32>
    %6 = arith.subf %5, %3 : vector<8x128xf32>
    %7 = math.log %4 : vector<8x128xf32>
    %8 = arith.mulf %6, %7 : vector<8x128xf32>
    %c0_4 = arith.constant 0 : index
    %c0_5 = arith.constant 0 : index
    %9 = vector.load %arg4[%c0_4, %c0_5] : memref<8x128xf32, #tpu.memory_space<vmem>>, vector<8x128xf32>
    %10 = vector.shape_cast %8 : vector<8x128xf32> to vector<1x8x128xf32>
    %cst_6 = arith.constant dense<0.000000e+00> : vector<8x128xf32>
    %11 = vector.multi_reduction <add>, %10, %cst_6 [0] : vector<1x8x128xf32> to vector<8x128xf32>
    %12 = arith.addf %9, %11 : vector<8x128xf32>
    %c0_7 = arith.constant 0 : index
    %c0_8 = arith.constant 0 : index
    %13 = vector.load %arg4[%c0_7, %c0_8] : memref<8x128xf32, #tpu.memory_space<vmem>>, vector<8x128xf32>
    tpu.vector_store %arg4[%c0_7, %c0_8], %12 {strides = array<i32>} : memref<8x128xf32, #tpu.memory_space<vmem>>, vector<8x128xf32>,
    return
  }
  func.func @transform_0(%arg0: i32, %arg1: i32) -> (i32, i32) {
    %c1_i32 = arith.constant 1 : i32
    %0 = arith.muli %arg0, %c1_i32 : i32
    %1 = arith.addi %0, %arg1 : i32
    %c0_i32 = arith.constant 0 : i32
    %2 = arith.minsi %1, %c0_i32 : i32
    %c0_i32_0 = arith.constant 0 : i32
    %c0_i32_1 = arith.constant 0 : i32
    return %2, %c0_i32_0 : i32, i32
  }
  func.func @transform_1(%arg0: i32, %arg1: i32) -> (i32, i32) {
    %c1_i32 = arith.constant 1 : i32
    %0 = arith.muli %arg0, %c1_i32 : i32
    %1 = arith.addi %0, %arg1 : i32
    %c0_i32 = arith.constant 0 : i32
    %2 = arith.minsi %1, %c0_i32 : i32
    %c0_i32_0 = arith.constant 0 : i32
    %c0_i32_1 = arith.constant 0 : i32
    return %2, %c0_i32_0 : i32, i32
  }
  func.func @transform_2(%arg0: i32, %arg1: i32) -> (i32, i32) {
    %c0_i32 = arith.constant 0 : i32
    %c0_i32_0 = arith.constant 0 : i32
    return %arg0, %c0_i32 : i32, i32
  }
}

</mosaic_0001>

<llo_original>
// kernel: tpu_custom_call.1
$region0: #{tpu_custom_call.1}
  #allocation0 [shape = 'u32[]', space=smem, size = 0x4, offset = 0x4, fixed_abs, tag = 'smem constant byte address 0x4 - core index']
  #allocation1 [shape = 'u32[144,128]{1,0:T(1,128)}', space=vmem, size = 0x12000, scoped, tag = 'internal scratch']
  %s0 = inlined_call_operand.hbm [shape: f32[8,128], index: 0, kind: input, shape index: {}]
  %s1 = inlined_call_operand.hbm [shape: f32[8,128], index: 1, kind: input, shape index: {}]
  %s2 = inlined_call_operand.hbm [shape: f32[8,128], index: 2, kind: output, shape index: {}]
  %s3 = sld [smem:[#allocation0]]
  $region30: #{tpu_custom_call.1} parent=0
    _
  %s5 = ssub.s32 1, %s3
  %s6 = scalar_select 0, %s5, %s3
  $region1: #{tpu_custom_call.1} parent=0
    #allocation2 [shape = 'u8[4096]{0}', space=vmem, size = 0x1000, scoped, tag = 'input window, operand 0, single buffered']
    #allocation3 [shape = 's32[1]{0}', space=sflag, size = 0x4, scoped, tag = 'scoped memory for tpu_custom_call.1']
    #allocation4 [shape = 's32[1]{0}', space=sflag, size = 0x4, scoped, tag = 'scoped memory for tpu_custom_call.1']
    #allocation5 [shape = 'u8[4096]{0}', space=vmem, size = 0x1000, scoped, tag = 'input window, operand 1, single buffered']
    #allocation6 [shape = 's32[1]{0}', space=sflag, size = 0x4, scoped, tag = 'scoped memory for tpu_custom_call.1']
    #allocation7 [shape = 'u8[4096]{0}', space=vmem, size = 0x1000, scoped, tag = 'output window, operand 0, single buffered']
    %7 = vsyncpa [#allocation3], 0
    %8 = vsyncpa [#allocation6], 0
    %9 = vsyncpa [#allocation4], 0
    // Predicated region
    $region2: #{tpu_custom_call.1} parent=1 // pred_check
      _
    $region3: #{tpu_custom_call.1} parent=1 // pred_check_branch
      %11 = sbr.rel (0) target = $region5
    $region4: #{tpu_custom_call.1} parent=1 // pred_region
      %s12 = sadd.s32 0, 0
      %p13 = scmp.lt.s32.totalorder %s12, 0
      %s14 = scalar_select %p13, %s12, 0
      %s16 = ssub.s32 128, 128
      %17 = vsyncadd [#allocation3], %s16
      %s18 = smul.addr %s14, 128
      %s19 = scalar_lea.hbm %s0, %s18
      %s21 = sshll.u32 [#allocation2], 4
      %s22 = int_to_ptr.vmem [resolvable:$true] %s21
      %24 = dma.hbm_to_vmem [thread:$0]  %s19, 128, %s22, [#allocation3]
    $region5: #{tpu_custom_call.1} parent=1 // pred_fallthru
      _
    // Predicated region
    $region6: #{tpu_custom_call.1} parent=1 // pred_check
      _
    $region7: #{tpu_custom_call.1} parent=1 // pred_check_branch
      %26 = sbr.rel (0) target = $region9
    $region8: #{tpu_custom_call.1} parent=1 // pred_region
      %s27 = sadd.s32 0, 0
      %p28 = scmp.lt.s32.totalorder %s27, 0
      %s29 = scalar_select %p28, %s27, 0
      %s31 = ssub.s32 128, 128
      %32 = vsyncadd [#allocation6], %s31
      %s33 = smul.addr %s29, 128
      %s34 = scalar_lea.hbm %s1, %s33
      %s36 = sshll.u32 [#allocation5], 4
      %s37 = int_to_ptr.vmem [resolvable:$true] %s36
      %39 = dma.hbm_to_vmem [thread:$0]  %s34, 128, %s37, [#allocation6]
    $region9: #{tpu_custom_call.1} parent=1 // pred_fallthru
      _
    // Predicated region
    $region10: #{tpu_custom_call.1} parent=1 // pred_check
      _
    $region11: #{tpu_custom_call.1} parent=1 // pred_check_branch
      %41 = sbr.rel (0) target = $region13
    $region12: #{tpu_custom_call.1} parent=1 // pred_region
      %42 = dma.done [#allocation3], 128
    $region13: #{tpu_custom_call.1} parent=1 // pred_fallthru
      _
    // Predicated region
    $region14: #{tpu_custom_call.1} parent=1 // pred_check
      _
    $region15: #{tpu_custom_call.1} parent=1 // pred_check_branch
      %44 = sbr.rel (0) target = $region17
    $region16: #{tpu_custom_call.1} parent=1 // pred_region
      %45 = dma.done [#allocation6], 128
    $region17: #{tpu_custom_call.1} parent=1 // pred_fallthru
      _
    %s46 = sadd.s32 0, 0
    %p47 = scmp.lt.s32.totalorder %s46, 0
    %s48 = scalar_select %p47, %s46, 0
    %s49 = sadd.s32 0, 0
    %p50 = scmp.lt.s32.totalorder %s49, 0
    %s51 = scalar_select %p50, %s49, 0
    %p52 = scmp.eq.s32.totalorder 0, 0
    // Predicated region
    $region18: #{tpu_custom_call.1} parent=1 // pred_check
      %p53 = pneg %p52
    $region19: #{tpu_custom_call.1} parent=1 // pred_check_branch
      %55 = sbr.rel (%p53) target = $region21
    $region20: #{tpu_custom_call.1} parent=1 // pred_region
      %56 = vst [vmem:[#allocation7] sm:$0xff] 0.0
    $region21: #{tpu_custom_call.1} parent=1 // pred_fallthru
      _
    %v57 = vld [vmem:[#allocation2] sm:$0xff]
    %v58 = vld [vmem:[#allocation5] sm:$0xff]
    %v59 = vsub.f32 0.0, %v57
    %v60 = vlog2.pop %v58
    %v61 = vmul.f32 %v60, 0.6931472
    %v62 = vmul.f32 %v59, %v61
    %v63 = vld [vmem:[#allocation7] sm:$0xff]
    %v64 = vadd.f32 %v62, 0.0
    %v65 = vadd.f32 %v63, %v64
    %66 = vst [vmem:[#allocation7] sm:$0xff] %v65
    // Predicated region
    $region22: #{tpu_custom_call.1} parent=1 // pred_check
      _
    $region23: #{tpu_custom_call.1} parent=1 // pred_check_branch
      %68 = sbr.rel (0) target = $region25
    $region24: #{tpu_custom_call.1} parent=1 // pred_region
      %s70 = ssub.s32 128, 128
      %71 = vsyncadd [#allocation4], %s70
      %s73 = sshll.u32 [#allocation7], 4
      %s74 = int_to_ptr.vmem [resolvable:$true] %s73
      %76 = dma.vmem_to_hbm [thread:$0]  %s74, 128, %s2, [#allocation4]
    $region25: #{tpu_custom_call.1} parent=1 // pred_fallthru
      _
    // Predicated region
    $region26: #{tpu_custom_call.1} parent=1 // pred_check
      _
    $region27: #{tpu_custom_call.1} parent=1 // pred_check_branch
      %78 = sbr.rel (0) target = $region29
    $region28: #{tpu_custom_call.1} parent=1 // pred_region
      %79 = dma.done [#allocation4], 128
    $region29: #{tpu_custom_call.1} parent=1 // pred_fallthru
      _
    %80 = vsyncpa [#allocation3], 1
    %81 = vsyncpa [#allocation6], 1
    %82 = vsyncpa [#allocation4], 1

</llo_original>
